<compile_context>
chip_gen: v6e
topology: v6e:2x2x1
jax: 0.10.0
libtpu: 0.0.40
codegen_flags: <defaults>
</compile_context>

<pallas_src>
import functools

import jax
import jax.numpy as jnp
from jax import lax
from jax.experimental import pallas as pl
from jax.experimental.pallas import tpu as pltpu


def _round_up(x, m):
    return ((x + m - 1) // m) * m


def _cdiv(a, b):
    return (a + b - 1) // b


def _pow_term(base, gamma, log_base):
    """base**gamma without hitting the EUP for integer gammas.

    Non-integer gammas reuse the log(base + eps) already computed for the loss
    term (a single EUP exp instead of a full pow = exp + log pair)."""
    g = float(gamma)
    if g == 0.0:
        return jnp.ones_like(base)
    if g.is_integer() and abs(g) <= 16:
        return lax.integer_pow(base, int(g))        # VPU multiply chain
    return jnp.exp(g * log_base)


def _asl_kernel(pred_ref, tgt_ref, out_ref, acc_ref, *, n_actual, batch_tile,
                tiles_per_partial, batch_axis, gamma_neg, gamma_pos, clip, eps):
    part = pl.program_id(0)   # partial-sum id (sharded across TCs on v7x)
    step = pl.program_id(1)   # tile index within this partial (reduction axis)

    @pl.when(step == 0)
    def _init():
        acc_ref[...] = jnp.zeros_like(acc_ref)

    logits = pred_ref[...].astype(jnp.float32)      # (C, tile) or (tile, C)
    shape = logits.shape
    class_axis = 1 - batch_axis

    # sigmoid via the (nearly free) approximate EUP reciprocal; p is clamped
    # right after, so the approximation error is negligible for a mean loss.
    p = pl.reciprocal(1.0 + jnp.exp(-logits), approx=True)
    if clip is not None and clip > 0:
        p = jnp.clip(p, float(clip), 1.0 - float(clip))
    else:
        p = jnp.clip(p, 0.0, 1.0)   # guard approx-recip overshoot if clip disabled

    log_p = jnp.log(p + eps)
    log_1mp = jnp.log(1.0 - p + eps)
    pos_term = log_p * _pow_term(1.0 - p, gamma_pos, log_1mp)
    neg_term = log_1mp * _pow_term(p, gamma_neg, log_p)

    # one-hot select as a single where; batch-padding mask folded into a second.
    cls = lax.broadcasted_iota(jnp.int32, shape, class_axis)
    is_tgt = cls == tgt_ref[...]                    # tgt has a size-1 class axis

    gidx = lax.broadcasted_iota(jnp.int32, shape, batch_axis)
    gidx = gidx + (part * tiles_per_partial + step) * batch_tile
    valid = gidx < n_actual

    sel = jnp.where(is_tgt, pos_term, neg_term)
    acc_ref[...] += jnp.where(valid, sel, 0.0)      # plain VPU add, no per-tile reduce

    @pl.when(step == tiles_per_partial - 1)
    def _finalize():
        total = jnp.sum(acc_ref[...])               # single XLU reduce per partial
        out_ref[...] = jnp.broadcast_to(-total, out_ref.shape)


def asymmetric_loss(pred, target, *, gamma_neg=4, gamma_pos=1, clip=0.05,
                    eps=1e-8, batch_tile=None, num_partials=None,
                    vmem_budget_bytes=12 * 1024 * 1024):
    """pred: (N, C) logits (any float dtype); target: (N,) int class indices."""
    n, c = pred.shape
    itemsize = jnp.dtype(pred.dtype).itemsize

    # Layout: small C -> batch on the 128-lane axis (one wrapper transpose);
    # C >= 128 -> stream the native (N, C) layout (no extra HBM pass).
    batch_on_lanes = c < 128
    align = 128 if batch_on_lanes else 8
    cap = 32768 if batch_on_lanes else 2048

    # Per-batch-element VMEM cost: double-buffered pred stream + f32 accumulator
    # (+ tiny target stream).  Budget kept generation-safe (fits v7x's 64 MiB).
    per_elem = c * (2 * itemsize + 4) + 2 * 4
    if batch_tile is None:
        bt = max(align, (vmem_budget_bytes // per_elem) // align * align)
        batch_tile = int(min(bt, cap, _round_up(n, align)))
    batch_tile = max(align, _round_up(int(batch_tile), align))

    tiles_total = _cdiv(n, batch_tile)
    if num_partials is None:
        num_partials = 2 if tiles_total >= 2 else 1   # v7x: one partial per TC
    num_partials = max(1, min(int(num_partials), tiles_total))
    tpp = _cdiv(tiles_total, num_partials)
    grid = (num_partials, tpp)

    if batch_on_lanes:
        batch_axis = 1
        n_pad = batch_tile * tpp * num_partials
        pred_in = jnp.pad(jnp.transpose(pred), ((0, 0), (0, n_pad - n)))
        tgt_in = jnp.pad(target.astype(jnp.int32).reshape(1, n),
                         ((0, 0), (0, n_pad - n)))
        in_specs = [
            pl.BlockSpec((c, batch_tile), lambda pc, i: (0, pc * tpp + i)),
            pl.BlockSpec((1, batch_tile), lambda pc, i: (0, pc * tpp + i)),
        ]
        acc_shape = (c, batch_tile)
    else:
        batch_axis = 0
        # Clamp so overshoot tiles simply re-read (and fully mask) the last block.
        last_blk = tiles_total - 1
        pred_in = pred
        tgt_in = target.astype(jnp.int32).reshape(n, 1)
        in_specs = [
            pl.BlockSpec((batch_tile, c),
                         lambda pc, i: (jnp.minimum(pc * tpp + i, last_blk), 0)),
            pl.BlockSpec((batch_tile, 1),
                         lambda pc, i: (jnp.minimum(pc * tpp + i, last_blk), 0)),
        ]
        acc_shape = (batch_tile, c)

    kernel = functools.partial(
        _asl_kernel, n_actual=n, batch_tile=batch_tile, tiles_per_partial=tpp,
        batch_axis=batch_axis, gamma_neg=gamma_neg, gamma_pos=gamma_pos,
        clip=clip, eps=float(eps))

    out = pl.pallas_call(
        kernel,
        out_shape=jax.ShapeDtypeStruct((num_partials, 8, 128), jnp.float32),
        grid_spec=pltpu.PrefetchScalarGridSpec(
            num_scalar_prefetch=0,
            grid=grid,
            in_specs=in_specs,
            out_specs=pl.BlockSpec((1, 8, 128), lambda pc, i: (pc, 0, 0)),
            scratch_shapes=[pltpu.VMEM(acc_shape, jnp.float32)],
        ),
        compiler_params=pltpu.CompilerParams(
            dimension_semantics=("parallel", "arbitrary"),
            vmem_limit_bytes=32 * 1024 * 1024,
        ),
    )(pred_in, tgt_in)

    # Each partial writes its (negated) sum broadcast over an (8,128) block.
    partial_sums = out[:, 0, 0]
    return jnp.sum(partial_sums) / float(n * c)


def _reference(pred, target, gamma_neg=4, gamma_pos=1, clip=0.05, eps=1e-8):
    n, c = pred.shape
    onehot = jax.nn.one_hot(target, c, dtype=jnp.float32)
    p = jax.nn.sigmoid(pred.astype(jnp.float32))
    if clip is not None and clip > 0:
        p = jnp.clip(p, clip, 1.0 - clip)
    pos = onehot * jnp.log(p + eps) * (1.0 - p) ** gamma_pos
    neg = (1.0 - onehot) * jnp.log(1.0 - p + eps) * p ** gamma_neg
    return jnp.mean(-(pos + neg))


if __name__ == "__main__":
    key = jax.random.PRNGKey(0)
    k1, k2, k3, k4 = jax.random.split(key, 4)

    # Tolerance is loose because the kernel uses the approximate EUP reciprocal
    # for the sigmoid (per perf review); real bugs shift the mean by >>1e-2.
    TOL = dict(rtol=5e-2, atol=1e-2)

    # Path A: small class count -> batch on the 128-lane axis (transposed stream).
    # batch_tile=128 forces multiple tiles + the 2-partial accumulator path.
    n1, c1 = 200, 5
    pred1 = jax.random.normal(k1, (n1, c1), dtype=jnp.float32)
    tgt1 = jax.random.randint(k2, (n1,), 0, c1, dtype=jnp.int32)
    loss1 = jax.block_until_ready(asymmetric_loss(pred1, tgt1, batch_tile=128))
    ref1 = _reference(pred1, tgt1)
    assert jnp.allclose(loss1, ref1, **TOL), (loss1, ref1)

    # Path B: C >= 128 -> stream the native (N, C) layout (no wrapper transpose),
    # batch on sublanes; small batch tile exercises row-padding + block clamping.
    n2, c2 = 50, 256
    pred2 = jax.random.normal(k3, (n2, c2), dtype=jnp.bfloat16)
    tgt2 = jax.random.randint(k4, (n2,), 0, c2, dtype=jnp.int32)
    loss2 = jax.block_until_ready(asymmetric_loss(pred2, tgt2, batch_tile=16))
    ref2 = _reference(pred2, tgt2)
    assert jnp.allclose(loss2, ref2, **TOL), (loss2, ref2)

    print("KERNEL_OK")
</pallas_src>

<mosaic_0001>
module attributes {stable_mosaic.version = 11 : i64} {
  func.func @_asl_kernel(%arg0: i32, %arg1: i32, %arg2: memref<5x128xf32, #tpu.memory_space<vmem>>, %arg3: memref<1x128xi32, #tpu.memory_space<vmem>>, %arg4: memref<1x8x128xf32, #tpu.memory_space<vmem>>, %arg5: memref<5x128xf32, #tpu.memory_space<vmem>>) attributes {dimension_semantics = [#tpu.dimension_semantics<parallel>, #tpu.dimension_semantics<arbitrary>], iteration_bounds = array<i64: 2, 1>, scalar_prefetch = 0 : i64, scratch_operands = 1 : i64, tpu.core_type = #tpu.core_type<tc>, window_params = [{transform_indices = @transform_0, window_bounds = array<i64: 5, 128>}, {transform_indices = @transform_1, window_bounds = array<i64: 1, 128>}, {transform_indices = @transform_2, window_bounds = array<i64: 1, 8, 128>}]} {
    %c0_i32 = arith.constant 0 : i32
    %0 = arith.cmpi eq, %arg1, %c0_i32 : i32
    %1 = arith.extui %0 : i1 to i32
    %c0_i32_0 = arith.constant 0 : i32
    %2 = arith.cmpi ne, %1, %c0_i32_0 : i32
    scf.if %2 {
      %cst_18 = arith.constant 0.000000e+00 : f32
      %49 = vector.broadcast %cst_18 : f32 to vector<5x128xf32>
      %c0_19 = arith.constant 0 : index
      %c0_20 = arith.constant 0 : index
      %50 = vector.load %arg5[%c0_19, %c0_20] : memref<5x128xf32, #tpu.memory_space<vmem>>, vector<5x128xf32>
      tpu.vector_store %arg5[%c0_19, %c0_20], %49 {strides = array<i32>} : memref<5x128xf32, #tpu.memory_space<vmem>>, vector<5x128xf32>,
    } else {
    }
    %c0 = arith.constant 0 : index
    %c0_1 = arith.constant 0 : index
    %3 = vector.load %arg2[%c0, %c0_1] : memref<5x128xf32, #tpu.memory_space<vmem>>, vector<5x128xf32>
    %cst = arith.constant 0.000000e+00 : f32
    %4 = vector.broadcast %cst : f32 to vector<5x128xf32>
    %5 = arith.subf %4, %3 : vector<5x128xf32>
    %6 = math.exp %5 : vector<5x128xf32>
    %cst_2 = arith.constant 1.000000e+00 : f32
    %7 = vector.broadcast %cst_2 : f32 to vector<5x128xf32>
    %8 = arith.addf %7, %6 : vector<5x128xf32>
    %9 = tpu.reciprocal %8 {approx = true} : vector<5x128xf32> -> vector<5x128xf32>
    %cst_3 = arith.constant 5.000000e-02 : f32
    %cst_4 = arith.constant 0.949999988 : f32
    %10 = vector.broadcast %cst_3 : f32 to vector<5x128xf32>
    %11 = arith.maximumf %10, %9 : vector<5x128xf32>
    %12 = vector.broadcast %cst_4 : f32 to vector<5x128xf32>
    %13 = arith.minimumf %12, %11 : vector<5x128xf32>
    %cst_5 = arith.constant 9.99999993E-9 : f32
    %14 = vector.broadcast %cst_5 : f32 to vector<5x128xf32>
    %15 = arith.addf %13, %14 : vector<5x128xf32>
    %16 = math.log %15 : vector<5x128xf32>
    %cst_6 = arith.constant 1.000000e+00 : f32
    %17 = vector.broadcast %cst_6 : f32 to vector<5x128xf32>
    %18 = arith.subf %17, %13 : vector<5x128xf32>
    %cst_7 = arith.constant 9.99999993E-9 : f32
    %19 = vector.broadcast %cst_7 : f32 to vector<5x128xf32>
    %20 = arith.addf %18, %19 : vector<5x128xf32>
    %21 = math.log %20 : vector<5x128xf32>
    %cst_8 = arith.constant 1.000000e+00 : f32
    %22 = vector.broadcast %cst_8 : f32 to vector<5x128xf32>
    %23 = arith.subf %22, %13 : vector<5x128xf32>
    %24 = arith.mulf %16, %23 : vector<5x128xf32>
    %25 = arith.mulf %13, %13 : vector<5x128xf32>
    %26 = arith.mulf %25, %25 : vector<5x128xf32>
    %27 = arith.mulf %21, %26 : vector<5x128xf32>
    %28 = tpu.iota {dimensions = array<i32: 0>} : vector<5x128xi32>
    %c0_9 = arith.constant 0 : index
    %c0_10 = arith.constant 0 : index
    %29 = vector.load %arg3[%c0_9, %c0_10] : memref<1x128xi32, #tpu.memory_space<vmem>>, vector<1x128xi32>
    %30 = vector.broadcast %29 : vector<1x128xi32> to vector<5x128xi32>
    %31 = arith.cmpi eq, %28, %30 : vector<5x128xi32>
    %32 = tpu.iota {dimensions = array<i32: 1>} : vector<5x128xi32>
    %c1_i32 = arith.constant 1 : i32
    %33 = arith.muli %arg0, %c1_i32 : i32
    %34 = arith.addi %33, %arg1 : i32
    %c128_i32 = arith.constant 128 : i32
    %35 = arith.muli %34, %c128_i32 : i32
    %36 = vector.broadcast %35 : i32 to vector<5x128xi32>
    %37 = arith.addi %32, %36 : vector<5x128xi32>
    %c200_i32 = arith.constant 200 : i32
    %38 = vector.broadcast %c200_i32 : i32 to vector<5x128xi32>
    %39 = arith.cmpi slt, %37, %38 : vector<5x128xi32>
    %40 = arith.select %31, %24, %27 : vector<5x128xi1>, vector<5x128xf32>
    %c0_11 = arith.constant 0 : index
    %c0_12 = arith.constant 0 : index
    %41 = vector.load %arg5[%c0_11, %c0_12] : memref<5x128xf32, #tpu.memory_space<vmem>>, vector<5x128xf32>
    %cst_13 = arith.constant 0.000000e+00 : f32
    %42 = vector.broadcast %cst_13 : f32 to vector<5x128xf32>
    %43 = arith.select %39, %40, %42 : vector<5x128xi1>, vector<5x128xf32>
    %44 = arith.addf %41, %43 : vector<5x128xf32>
    %c0_14 = arith.constant 0 : index
    %c0_15 = arith.constant 0 : index
    %45 = vector.load %arg5[%c0_14, %c0_15] : memref<5x128xf32, #tpu.memory_space<vmem>>, vector<5x128xf32>
    tpu.vector_store %arg5[%c0_14, %c0_15], %44 {strides = array<i32>} : memref<5x128xf32, #tpu.memory_space<vmem>>, vector<5x128xf32>,
    %c0_i32_16 = arith.constant 0 : i32
    %46 = arith.cmpi eq, %arg1, %c0_i32_16 : i32
    %47 = arith.extui %46 : i1 to i32
    %c0_i32_17 = arith.constant 0 : i32
    %48 = arith.cmpi ne, %47, %c0_i32_17 : i32
    scf.if %48 {
      %c0_18 = arith.constant 0 : index
      %c0_19 = arith.constant 0 : index
      %49 = vector.load %arg5[%c0_18, %c0_19] : memref<5x128xf32, #tpu.memory_space<vmem>>, vector<5x128xf32>
      %50 = vector.shape_cast %49 : vector<5x128xf32> to vector<1x5x128xf32>
      %cst_20 = arith.constant dense<0.000000e+00> : vector<1xf32>
      %51 = vector.multi_reduction <add>, %50, %cst_20 [1, 2] : vector<1x5x128xf32> to vector<1xf32>
      %52 = vector.shape_cast %51 : vector<1xf32> to vector<1x1x1xf32>
      %53 = vector.extract %52[0, 0, 0] : f32 from vector<1x1x1xf32>
      %cst_21 = arith.constant 0.000000e+00 : f32
      %54 = arith.subf %cst_21, %53 : f32
      %55 = vector.broadcast %54 : f32 to vector<1x8x128xf32>
      %c0_22 = arith.constant 0 : index
      %c0_23 = arith.constant 0 : index
      %c0_24 = arith.constant 0 : index
      %56 = vector.load %arg4[%c0_22, %c0_23, %c0_24] : memref<1x8x128xf32, #tpu.memory_space<vmem>>, vector<1x8x128xf32>
      tpu.vector_store %arg4[%c0_22, %c0_23, %c0_24], %55 {strides = array<i32>} : memref<1x8x128xf32, #tpu.memory_space<vmem>>, vector<1x8x128xf32>,
    } else {
    }
    return
  }
  func.func @transform_0(%arg0: i32, %arg1: i32) -> (i32, i32) {
    %c1_i32 = arith.constant 1 : i32
    %0 = arith.muli %arg0, %c1_i32 : i32
    %1 = arith.addi %0, %arg1 : i32
    %c0_i32 = arith.constant 0 : i32
    %c0_i32_0 = arith.constant 0 : i32
    return %c0_i32, %1 : i32, i32
  }
  func.func @transform_1(%arg0: i32, %arg1: i32) -> (i32, i32) {
    %c1_i32 = arith.constant 1 : i32
    %0 = arith.muli %arg0, %c1_i32 : i32
    %1 = arith.addi %0, %arg1 : i32
    %c0_i32 = arith.constant 0 : i32
    %c0_i32_0 = arith.constant 0 : i32
    return %c0_i32, %1 : i32, i32
  }
  func.func @transform_2(%arg0: i32, %arg1: i32) -> (i32, i32, i32) {
    %c0_i32 = arith.constant 0 : i32
    %c0_i32_0 = arith.constant 0 : i32
    %c0_i32_1 = arith.constant 0 : i32
    return %arg0, %c0_i32, %c0_i32_0 : i32, i32, i32
  }
}

</mosaic_0001>

<llo_original>
// kernel: tpu_custom_call.1
$region0: #{tpu_custom_call.1}
  #allocation0 [shape = 'u32[]', space=smem, size = 0x4, offset = 0x4, fixed_abs, tag = 'smem constant byte address 0x4 - core index']
  #allocation1 [shape = 'u32[144,128]{1,0:T(1,128)}', space=vmem, size = 0x12000, scoped, tag = 'internal scratch']
  #allocation2 [shape = 'f32[5,128]{1,0:T(8,128)}', space=vmem, size = 0x1000, scoped, tag = 'scratch operand']
  %s0 = inlined_call_operand.hbm [shape: f32[5,256], index: 0, kind: input, shape index: {}]
  %s1 = inlined_call_operand.hbm [shape: s32[1,256], index: 1, kind: input, shape index: {}]
  %s2 = inlined_call_operand.hbm [shape: f32[2,8,128], index: 2, kind: output, shape index: {}]
  %s3 = sld [smem:[#allocation0]]
  $region57: #{tpu_custom_call.1} parent=0
    _
  %s5 = ssub.s32 1, %s3
  %s6 = scalar_select 0, %s5, %s3
  $region1: #{tpu_custom_call.1} parent=0
    #allocation3 [shape = 'u8[8192]{0}', space=vmem, size = 0x2000, scoped, tag = 'input window, operand 0']
    #allocation4 [shape = 's32[2]{0}', space=sflag, size = 0x8, scoped, tag = 'scoped memory for tpu_custom_call.1']
    #allocation5 [shape = 's32[2]{0}', space=sflag, size = 0x8, scoped, tag = 'scoped memory for tpu_custom_call.1']
    #allocation6 [shape = 'u8[1024]{0}', space=vmem, size = 0x400, scoped, tag = 'input window, operand 1']
    #allocation7 [shape = 's32[2]{0}', space=sflag, size = 0x8, scoped, tag = 'scoped memory for tpu_custom_call.1']
    #allocation8 [shape = 'u8[8192]{0}', space=vmem, size = 0x2000, scoped, tag = 'output window, operand 0']
    %7 = vsyncpa [#allocation4], 0
    %s8 = scalar_lea.sflag [#allocation4], 1
    %9 = vsyncpa %s8, 0
    %10 = vsyncpa [#allocation7], 0
    %s11 = scalar_lea.sflag [#allocation7], 1
    %12 = vsyncpa %s11, 0
    %13 = vsyncpa [#allocation5], 0
    %s14 = scalar_lea.sflag [#allocation5], 1
    %15 = vsyncpa %s14, 0
    loop: start=0, step=1, limit=4
    $region2: #{tpu_custom_call.1} parent=1 // loop_pre_header
      _
    $region3: #{tpu_custom_call.1} parent=1 // loop_header
      %s17 = sphi 0, %s21
      %p18 = scmp.ge.s32.totalorder %s17, 4
      %s24 = sphi 0, %s36
      %s25 = sphi 0, %s32
      %s26 = sphi 0, %s24
      %s27 = sphi 0, %s25
      %s28 = sphi 0, %s26
      %s29 = sphi 0, %s27
      %s41 = sphi 0, %s43
      %s44 = sphi 0, %s41
      %s45 = sphi 0, %s44
      %s61 = sphi 0, %s45
      %s69 = sphi 0, %s71
      %s72 = sphi 0, %s69
      %s73 = sphi 0, %s72
      %s89 = sphi 0, %s73
      %s95 = sphi 0, %s97
      %s98 = sphi 0, %s95
      %s99 = sphi 0, %s98
      %s115 = sphi 0, %s99
    $region4: #{tpu_custom_call.1} parent=1 // loop_header_branch
      %20 = sbr.rel (%p18) target = $region8
    $region5: #{tpu_custom_call.1} parent=1 // loop_body
      %s22 = ssub.s32 %s17, 1
      %s23 = ssub.s32 %s17, 2
      %s30 = sadd.s32 1, %s25
      %p31 = scmp.ge.s32.totalorder %s30, 1
      %s32 = scalar_select %p31, 0, %s30
      %s33 = sadd.s32 1, %s24
      %s34 = scalar_select %p31, %s33, %s24
      %p35 = scmp.ge.s32.totalorder %s34, 2
      %s36 = scalar_select %p35, 0, %s34
      %s37 = sadd.s32 %s24, %s25
      %s38 = sadd.s32 %s36, %s32
      %s39 = ssub.s32 %s37, %s38
      %p40 = scmp.eq.s32.totalorder %s39, 0
      %s42 = sadd.s32 %s41, 1
      %s43 = scalar_select %p40, %s41, %s42
      %p46 = pneg %p40
      %p47 = scmp.eq.s32.totalorder %s17, 1
      %p48 = por %p46, %p47
      %p49 = scmp.ne.s32.totalorder %s41, %s44
      %p50 = scmp.eq.s32.totalorder %s17, 0
      %p51 = por %p49, %p50
      %p52 = scmp.ne.s32.totalorder %s41, %s44
      %p53 = scmp.eq.s32.totalorder %s22, 1
      %p54 = por %p52, %p53
      %p55 = scmp.ne.s32.totalorder %s44, %s45
      %p56 = scmp.eq.s32.totalorder %s22, 0
      %p57 = por %p55, %p56
      %p58 = scmp.ne.s32.totalorder %s44, %s45
      %p59 = scmp.eq.s32.totalorder %s23, 1
      %p60 = por %p58, %p59
      %p62 = scmp.ne.s32.totalorder %s45, %s61
      %p63 = scmp.eq.s32.totalorder %s23, 0
      %p64 = por %p62, %p63
      %s65 = sadd.s32 %s24, %s25
      %s66 = sadd.s32 %s36, %s32
      %s67 = ssub.s32 %s65, %s66
      %p68 = scmp.eq.s32.totalorder %s67, 0
      %s70 = sadd.s32 %s69, 1
      %s71 = scalar_select %p68, %s69, %s70
      %p74 = pneg %p68
      %p75 = scmp.eq.s32.totalorder %s17, 1
      %p76 = por %p74, %p75
      %p77 = scmp.ne.s32.totalorder %s69, %s72
      %p78 = scmp.eq.s32.totalorder %s17, 0
      %p79 = por %p77, %p78
      %p80 = scmp.ne.s32.totalorder %s69, %s72
      %p81 = scmp.eq.s32.totalorder %s22, 1
      %p82 = por %p80, %p81
      %p83 = scmp.ne.s32.totalorder %s72, %s73
      %p84 = scmp.eq.s32.totalorder %s22, 0
      %p85 = por %p83, %p84
      %p86 = scmp.ne.s32.totalorder %s72, %s73
      %p87 = scmp.eq.s32.totalorder %s23, 1
      %p88 = por %p86, %p87
      %p90 = scmp.ne.s32.totalorder %s73, %s89
      %p91 = scmp.eq.s32.totalorder %s23, 0
      %p92 = por %p90, %p91
      %s93 = ssub.s32 %s24, %s36
      %p94 = scmp.eq.s32.totalorder %s93, 0
      %s96 = sadd.s32 %s95, 1
      %s97 = scalar_select %p94, %s95, %s96
      %p100 = pneg %p94
      %p101 = scmp.eq.s32.totalorder %s17, 1
      %p102 = por %p100, %p101
      %p103 = scmp.ne.s32.totalorder %s95, %s98
      %p104 = scmp.eq.s32.totalorder %s17, 0
      %p105 = por %p103, %p104
      %p106 = scmp.ne.s32.totalorder %s95, %s98
      %p107 = scmp.eq.s32.totalorder %s22, 1
      %p108 = por %p106, %p107
      %p109 = scmp.ne.s32.totalorder %s98, %s99
      %p110 = scmp.eq.s32.totalorder %s22, 0
      %p111 = por %p109, %p110
      %p112 = scmp.ne.s32.totalorder %s98, %s99
      %p113 = scmp.eq.s32.totalorder %s23, 1
      %p114 = por %p112, %p113
      %p116 = scmp.ne.s32.totalorder %s99, %s115
      %p117 = scmp.eq.s32.totalorder %s23, 0
      %p118 = por %p116, %p117
      %p119 = scmp.le.s32.totalorder 1, %s17
      %p120 = scmp.lt.s32.totalorder %s17, 3
      %p121 = pnand %p119, %p120
      %p122 = pneg %p121
      // Predicated region
      $region9: #{tpu_custom_call.1} parent=5 // pred_check
        _
      $region10: #{tpu_custom_call.1} parent=5 // pred_check_branch
        %124 = sbr.rel (%p121) target = $region12
      $region11: #{tpu_custom_call.1} parent=5 // pred_region
        %s125 = ssub.s32 %s17, 1
      $region12: #{tpu_custom_call.1} parent=5 // pred_fallthru
        _
      %p126 = scmp.lt.s32.totalorder %s17, 2
      // Predicated region
      $region13: #{tpu_custom_call.1} parent=5 // pred_check
        %p127 = pneg %p126
      $region14: #{tpu_custom_call.1} parent=5 // pred_check_branch
        %129 = sbr.rel (%p127) target = $region16
      $region15: #{tpu_custom_call.1} parent=5 // pred_region
        // Predicated region
        $region17: #{tpu_custom_call.1} parent=15 // pred_check
          %p130 = pneg %p51
        $region18: #{tpu_custom_call.1} parent=15 // pred_check_branch
          %132 = sbr.rel (%p130) target = $region20
        $region19: #{tpu_custom_call.1} parent=15 // pred_region
          %s133 = sand.u32 %s41, 1
          %s134 = scalar_lea.sflag [#allocation4], %s133
          %s135 = sand.u32 %s41, 1
          %s136 = smul.addr %s135, 8
          %s137 = scalar_lea.vmem [#allocation3], %s136
          %s138 = sadd.s32 %s24, %s25
          %s140 = ssub.s32 128, 128
          %141 = vsyncadd %s134, %s140
          %s142 = smul.addr %s138, 128
          %s143 = scalar_lea.hbm %s0, %s142
          %s145 = sshll.u32 %s137, 4
          %s146 = int_to_ptr.vmem [resolvable:$true] %s145
          %148 = dma.hbm_to_vmem [thread:$0]  %s143, 128, %s146, %s134
        $region20: #{tpu_custom_call.1} parent=15 // pred_fallthru
          _
        // Predicated region
        $region21: #{tpu_custom_call.1} parent=15 // pred_check
          %p149 = pneg %p79
        $region22: #{tpu_custom_call.1} parent=15 // pred_check_branch
          %151 = sbr.rel (%p149) target = $region24
        $region23: #{tpu_custom_call.1} parent=15 // pred_region
          %s152 = sand.u32 %s69, 1
          %s153 = scalar_lea.sflag [#allocation7], %s152
          %s154 = sand.u32 %s69, 1
          %s155 = scalar_lea.vmem [#allocation6], %s154
          %s156 = sadd.s32 %s24, %s25
          %s158 = ssub.s32 16, 16
          %159 = vsyncadd %s153, %s158
          %s160 = smul.addr %s156, 16
          %s161 = scalar_lea.hbm %s1, %s160
          %s163 = sshll.u32 %s155, 4
          %s164 = int_to_ptr.vmem [resolvable:$true] %s163
          %166 = dma.hbm_to_vmem [thread:$0]  %s161, 16, %s164, %s153
        $region24: #{tpu_custom_call.1} parent=15 // pred_fallthru
          _
      $region16: #{tpu_custom_call.1} parent=5 // pred_fallthru
        _
      %p167 = scmp.le.s32.totalorder 1, %s17
      %p168 = scmp.lt.s32.totalorder %s17, 3
      %p169 = pnand %p167, %p168
      %p170 = pneg %p169
      // Predicated region
      $region25: #{tpu_custom_call.1} parent=5 // pred_check
        _
      $region26: #{tpu_custom_call.1} parent=5 // pred_check_branch
        %172 = sbr.rel (%p169) target = $region28
      $region27: #{tpu_custom_call.1} parent=5 // pred_region
        %s173 = ssub.s32 %s17, 1
        %s174 = sand.u32 %s44, 1
        %s175 = scalar_lea.sflag [#allocation4], %s174
        %s176 = sand.u32 %s44, 1
        %s177 = smul.addr %s176, 8
        %s178 = scalar_lea.vmem [#allocation3], %s177
        // Predicated region
        $region29: #{tpu_custom_call.1} parent=27 // pred_check
          %p179 = pneg %p57
        $region30: #{tpu_custom_call.1} parent=27 // pred_check_branch
          %181 = sbr.rel (%p179) target = $region32
        $region31: #{tpu_custom_call.1} parent=27 // pred_region
          %182 = dma.done %s175, 128
        $region32: #{tpu_custom_call.1} parent=27 // pred_fallthru
          _
        %s183 = sand.u32 %s72, 1
        %s184 = scalar_lea.sflag [#allocation7], %s183
        %s185 = sand.u32 %s72, 1
        %s186 = scalar_lea.vmem [#allocation6], %s185
        // Predicated region
        $region33: #{tpu_custom_call.1} parent=27 // pred_check
          %p187 = pneg %p85
        $region34: #{tpu_custom_call.1} parent=27 // pred_check_branch
          %189 = sbr.rel (%p187) target = $region36
        $region35: #{tpu_custom_call.1} parent=27 // pred_region
          %190 = dma.done %s184, 16
        $region36: #{tpu_custom_call.1} parent=27 // pred_fallthru
          _
        %s191 = sand.u32 %s44, 1
        %s192 = scalar_lea.sflag [#allocation4], %s191
        %s193 = sand.u32 %s44, 1
        %s194 = smul.addr %s193, 8
        %s195 = scalar_lea.vmem [#allocation3], %s194
        %p196 = pneg %p57
        %p197 = pneg %p54
        %s198 = sand.u32 %s72, 1
        %s199 = scalar_lea.sflag [#allocation7], %s198
        %s200 = sand.u32 %s72, 1
        %s201 = scalar_lea.vmem [#allocation6], %s200
        %p202 = pneg %p85
        %p203 = pneg %p82
        %p204 = pneg %p111
        %p205 = pneg %p108
        %s206 = sand.u32 %s98, 1
        %s207 = scalar_lea.sflag [#allocation5], %s206
        %s208 = sand.u32 %s98, 1
        %s209 = smul.addr %s208, 8
        %s210 = scalar_lea.vmem [#allocation8], %s209
        %s211 = sadd.s32 %s26, %s27
        %s212 = sadd.s32 %s26, %s27
        %p213 = scmp.eq.s32.totalorder %s27, 0
        // Predicated region
        $region37: #{tpu_custom_call.1} parent=27 // pred_check
          %p214 = pneg %p213
        $region38: #{tpu_custom_call.1} parent=27 // pred_check_branch
          %216 = sbr.rel (%p214) target = $region40
        $region39: #{tpu_custom_call.1} parent=27 // pred_region
          %217 = vst [vmem:[#allocation2] sm:$0x1f] 0.0
        $region40: #{tpu_custom_call.1} parent=27 // pred_fallthru
          _
        %v218 = vld [vmem:[%s178] sm:$0x1f]
        %v219 = vsub.f32 0.0, %v218
        %v220 = vmul.f32 %v219, 1.442695
        %v221 = vpow.pop %v220
        %v222 = vadd.f32 %v221, 1.0
        %v223 = vrcp.pop %v222
        %v224 = vmax.f32 %v223, 0.05
        %v225 = vmin.f32 %v224, 0.95
        %v226 = vadd.f32 %v225, 1e-08
        %v227 = vlog2.pop %v226
        %v228 = vmul.f32 %v227, 0.6931472
        %v229 = vsub.f32 1.0, %v225
        %v230 = vadd.f32 %v229, 1e-08
        %v231 = vlog2.pop %v230
        %v232 = vmul.f32 %v231, 0.6931472
        %v233 = vmul.f32 %v228, %v229
        %v234 = vmul.f32 %v225, %v225
        %v235 = vmul.f32 %v234, %v234
        %v236 = vmul.f32 %v232, %v235
        %v237 = vlaneseq
        %v238 = vshrl.u32 %v237, 7
        %v239 = vld [vmem:[%s186] sm:$0x1]
        %v240 = vlaneseq
        %v241 = vshrl.u32 %v240, 7
        %v242 = vsub.s32 0, %v241
        %v243 = vrot.slane %v239, %v242
        %vm244 = vcmp.eq.s32.totalorder %v238, %v243
        %v245 = vlaneseq
        %v246 = vand.u32 %v245, 127
        %s247 = sadd.s32 %s26, %s27
        %s248 = smul.u32 %s247, 128
        %v249 = vstv %s248
        %v250 = vadd.s32 %v246, %v249
        %vm251 = vcmp.lt.s32.totalorder %v250, 200
        %v252 = vsel %vm244, %v233, %v236
        %v253 = vld [vmem:[#allocation2] sm:$0x1f]
        %v254 = vsel %vm251, %v252, 0.0
        %v255 = vadd.f32 %v253, %v254
        %256 = vst [vmem:[#allocation2] sm:$0x1f] %v255
        // Predicated region
        $region41: #{tpu_custom_call.1} parent=27 // pred_check
          %p257 = pneg %p213
        $region42: #{tpu_custom_call.1} parent=27 // pred_check_branch
          %259 = sbr.rel (%p257) target = $region44
        $region43: #{tpu_custom_call.1} parent=27 // pred_region
          %v260 = vld [vmem:[#allocation2] sm:$0x1f]
          %vm261 = vcmask 1044480
          %v262 = vsel %vm261, %v260, 0.0
          %263 = vadd.xlane.f32.xlu0 %v262
          %v264 = vpop.xlane.xlu0 %263
          %v265 = vrot.slane %v264, 4
          %v266 = vadd.f32 %v264, %v265
          %v267 = vrot.slane %v266, 2
          %v268 = vadd.f32 %v266, %v267
          %v269 = vrot.slane %v268, 1
          %v270 = vadd.f32 %v268, %v269
          %s271 = vtos %v270
          %s272 = ssub.f32 0.0, %s271
          %v273 = vstv %s272
          %274 = vst [vmem:[%s210] sm:$0xff] %v273
        $region44: #{tpu_custom_call.1} parent=27 // pred_fallthru
          _
        %s275 = sand.u32 %s98, 1
        %s276 = scalar_lea.sflag [#allocation5], %s275
        %s277 = sand.u32 %s98, 1
        %s278 = smul.addr %s277, 8
        %s279 = scalar_lea.vmem [#allocation8], %s278
        // Predicated region
        $region45: #{tpu_custom_call.1} parent=27 // pred_check
          %p280 = pneg %p108
        $region46: #{tpu_custom_call.1} parent=27 // pred_check_branch
          %282 = sbr.rel (%p280) target = $region48
        $region47: #{tpu_custom_call.1} parent=27 // pred_region
          %s284 = ssub.s32 128, 128
          %285 = vsyncadd %s276, %s284
          %s286 = smul.addr %s26, 128
          %s287 = scalar_lea.hbm %s2, %s286
          %s289 = sshll.u32 %s279, 4
          %s290 = int_to_ptr.vmem [resolvable:$true] %s289
          %292 = dma.vmem_to_hbm [thread:$0]  %s290, 128, %s287, %s276
        $region48: #{tpu_custom_call.1} parent=27 // pred_fallthru
          _
      $region28: #{tpu_custom_call.1} parent=5 // pred_fallthru
        _
      %p293 = scmp.le.s32.totalorder 2, %s17
      // Predicated region
      $region49: #{tpu_custom_call.1} parent=5 // pred_check
        %p294 = pneg %p293
      $region50: #{tpu_custom_call.1} parent=5 // pred_check_branch
        %296 = sbr.rel (%p294) target = $region52
      $region51: #{tpu_custom_call.1} parent=5 // pred_region
        %s297 = ssub.s32 %s17, 2
        // Predicated region
        $region53: #{tpu_custom_call.1} parent=51 // pred_check
          %p298 = pneg %p114
        $region54: #{tpu_custom_call.1} parent=51 // pred_check_branch
          %300 = sbr.rel (%p298) target = $region56
        $region55: #{tpu_custom_call.1} parent=51 // pred_region
          %s301 = sand.u32 %s99, 1
          %s302 = scalar_lea.sflag [#allocation5], %s301
          %s303 = sand.u32 %s99, 1
          %s304 = smul.addr %s303, 8
          %s305 = scalar_lea.vmem [#allocation8], %s304
          %306 = dma.done %s302, 128
        $region56: #{tpu_custom_call.1} parent=51 // pred_fallthru
          _
      $region52: #{tpu_custom_call.1} parent=5 // pred_fallthru
        _
    $region6: #{tpu_custom_call.1} parent=1 // loop_footer
      %s21 = sadd.s32 1, %s17
    $region7: #{tpu_custom_call.1} parent=1 // loop_footer_branch
      %16 = sbr.rel target = $region3
    $region8: #{tpu_custom_call.1} parent=1 // loop_exit
      _
    %307 = vsyncpa [#allocation4], 1
    %s308 = scalar_lea.sflag [#allocation4], 1
    %309 = vsyncpa %s308, 1
    %310 = vsyncpa [#allocation7], 1
    %s311 = scalar_lea.sflag [#allocation7], 1
    %312 = vsyncpa %s311, 1
    %313 = vsyncpa [#allocation5], 1
    %s314 = scalar_lea.sflag [#allocation5], 1
    %315 = vsyncpa %s314, 1

</llo_original>
